<compile_context>
chip_gen: v7x
topology: tpu7x:2x2x1
jax: 0.10.0
libtpu: 0.0.40
codegen_flags: <defaults>
</compile_context>

<pallas_src>
import functools

import jax
import jax.numpy as jnp
from jax import lax
from jax.experimental import pallas as pl
from jax.experimental.pallas import tpu as pltpu


def _round_up(v, m):
    return (v + m - 1) // m * m


def attention_projection_kernel(x_ref, keys_ref, wa1q_ref, wa1k_ref, wa2_ref,
                                wpx_ref, wpa_ref, out_ref,
                                sq_ref, m_ref, l_ref, acc_ref,
                                *, seq_len, seq_tile):
    s = pl.program_id(1)

    @pl.when(s == 0)
    def _init():
        # query half of the attention MLP depends only on x: compute once per batch block
        sq_ref[...] = jnp.dot(x_ref[...], wa1q_ref[...],
                              preferred_element_type=jnp.float32)
        m_ref[...] = jnp.full_like(m_ref, -jnp.inf)
        l_ref[...] = jnp.zeros_like(l_ref)
        acc_ref[...] = jnp.zeros_like(acc_ref)

    keys_t = keys_ref[...]                                          # [bb, ts, D] bf16
    # MLP attention pre-activations for this key tile (batch-major).
    sk = lax.dot_general(keys_t, wa1k_ref[...],
                         dimension_numbers=(((2,), (0,)), ((), ())),
                         preferred_element_type=jnp.float32)        # [bb, ts, nh_p]
    h1 = jnp.tanh(sk + sq_ref[...][:, None, :])                     # [bb, ts, nh_p]
    # w2 has a single output unit: VPU multiply + lane reduce, not an N=1 MXU matmul.
    scores = jnp.sum(h1 * wa2_ref[...].astype(jnp.float32), axis=-1)   # [bb, ts]

    if seq_len % seq_tile != 0:   # mask the zero-padded tail of the key tensor
        col = s * seq_tile + lax.broadcasted_iota(jnp.int32, scores.shape, 1)
        scores = jnp.where(col < seq_len, scores, -1e30)

    # ---- online softmax over the sequence axis ------------------------------
    m_prev = m_ref[...]
    m_new = jnp.maximum(m_prev, jnp.max(scores, axis=-1, keepdims=True))   # [bb, 1]
    alpha = jnp.exp(m_prev - m_new)
    p = jnp.exp(scores - m_new)                                            # [bb, ts]
    l_ref[...] = alpha * l_ref[...] + jnp.sum(p, axis=-1, keepdims=True)
    # weighted sum of the values (values == keys)
    pv = jnp.sum(p[:, :, None] * keys_t.astype(jnp.float32), axis=1)       # [bb, D]
    acc_ref[...] = alpha * acc_ref[...] + pv
    m_ref[...] = m_new

    @pl.when(s == pl.num_programs(1) - 1)
    def _finalize():
        attn_out = acc_ref[...] * pl.reciprocal(l_ref[...], approx=True)   # [bb, D]
        # projection2(projection1(cat(x, attn_out))) with the two bias-free
        # linears folded offline into wpx / wpa.
        out = jnp.dot(x_ref[...], wpx_ref[...], preferred_element_type=jnp.float32)
        out += jnp.dot(attn_out.astype(wpa_ref.dtype), wpa_ref[...],
                       preferred_element_type=jnp.float32)
        out_ref[...] = out.astype(out_ref.dtype)                           # lane-dense store


def prepare_attention_projection_params(wa1, wa2, wp1, wp2, *,
                                         param_dtype=jnp.bfloat16, lane=128):
    """One-time (model-load) weight prep: split / transpose / fold / pad / cast.

    wa1: [att_nhid, 2D], wa2: [1, att_nhid]   (MLPAttention linear1/linear2, no bias)
    wp1: [D, 2D]                              (projection1 Linear, no bias)
    wp2: [output_size, D]                     (projection2 Linear, no bias)
    """
    nh, two_d = wa1.shape
    d = two_d // 2
    out = wp2.shape[0]
    nh_p = _round_up(nh, lane)
    out_p = _round_up(out, lane)
    f32 = jnp.float32
    wa1, wa2, wp1, wp2 = (w.astype(f32) for w in (wa1, wa2, wp1, wp2))

    wa1q = jnp.zeros((d, nh_p), f32).at[:, :nh].set(wa1[:, :d].T)
    wa1k = jnp.zeros((d, nh_p), f32).at[:, :nh].set(wa1[:, d:].T)
    wa2r = jnp.zeros((1, nh_p), f32).at[:, :nh].set(wa2)
    # projection2 o projection1 is a bias-free linear chain (dropout is identity
    # in eval mode) -> fold offline into two [D, out_p] matrices.
    wpx = jnp.zeros((d, out_p), f32).at[:, :out].set((wp2 @ wp1[:, :d]).T)
    wpa = jnp.zeros((d, out_p), f32).at[:, :out].set((wp2 @ wp1[:, d:]).T)

    cast = lambda a: a.astype(param_dtype)
    return dict(wa1q=cast(wa1q), wa1k=cast(wa1k), wa2=cast(wa2r),
                wpx=cast(wpx), wpa=cast(wpa), out_size=out)


def attention_projection(x, keys, params, *, seq_tile=256, batch_block=None):
    """x: [bs, D]; keys: [seq_len, bs, D] (quicknlp layout). Returns [1, bs, out]."""
    bs, d = x.shape
    sl = keys.shape[0]
    out_size = params["out_size"]
    nh_p = params["wa1q"].shape[1]
    out_p = params["wpx"].shape[1]
    dtype = params["wa1q"].dtype

    # Batch-major keys so every in-kernel reduction runs over the lane axis.
    # TODO(synk): in a real decoder loop this belongs in reset(), once per sequence.
    keys_bt = jnp.swapaxes(keys, 0, 1).astype(dtype)                # [bs, sl, D]
    x_c = x.astype(dtype)

    ts = min(_round_up(sl, 8), _round_up(seq_tile, 8))
    sl_pad = _round_up(sl, ts)
    if sl_pad != sl:
        keys_bt = jnp.pad(keys_bt, ((0, 0), (0, sl_pad - sl), (0, 0)))
    n_s = sl_pad // ts

    bb = bs if batch_block is None else batch_block
    assert bs % bb == 0 and (bb == bs or bb % 8 == 0), (bs, bb)
    n_b = bs // bb

    kernel = functools.partial(attention_projection_kernel, seq_len=sl, seq_tile=ts)

    out = pl.pallas_call(
        kernel,
        out_shape=jax.ShapeDtypeStruct((bs, out_p), jnp.float32),
        grid_spec=pltpu.PrefetchScalarGridSpec(
            num_scalar_prefetch=0,
            grid=(n_b, n_s),
            in_specs=[
                pl.BlockSpec((bb, d), lambda b, s: (b, 0)),           # x
                pl.BlockSpec((bb, ts, d), lambda b, s: (b, s, 0)),    # keys (batch-major)
                pl.BlockSpec((d, nh_p), lambda b, s: (0, 0)),         # W1, query half
                pl.BlockSpec((d, nh_p), lambda b, s: (0, 0)),         # W1, key half
                pl.BlockSpec((1, nh_p), lambda b, s: (0, 0)),         # w2 row
                pl.BlockSpec((d, out_p), lambda b, s: (0, 0)),        # folded proj, x half
                pl.BlockSpec((d, out_p), lambda b, s: (0, 0)),        # folded proj, attn half
            ],
            out_specs=pl.BlockSpec((bb, out_p), lambda b, s: (b, 0)),
            scratch_shapes=[
                pltpu.VMEM((bb, nh_p), jnp.float32),   # sq (query-half activations)
                pltpu.VMEM((bb, 1), jnp.float32),      # running softmax max
                pltpu.VMEM((bb, 1), jnp.float32),      # running softmax denom
                pltpu.VMEM((bb, d), jnp.float32),      # attention output accumulator
            ],
        ),
        compiler_params=pltpu.CompilerParams(
            dimension_semantics=("parallel", "arbitrary")),
    )(x_c, keys_bt, params["wa1q"], params["wa1k"], params["wa2"],
      params["wpx"], params["wpa"])

    return out[:, :out_size].reshape(1, bs, out_size)


def reference(x, keys, wa1, wa2, wp1, wp2):
    sl, bs, d = keys.shape
    q = jnp.broadcast_to(x[None], (sl, bs, d))
    con = jnp.concatenate([q, keys], axis=-1)                        # [sl, bs, 2D]
    scores = jnp.tanh(con @ wa1.T) @ wa2.T                           # [sl, bs, 1]
    attn = jax.nn.softmax(scores[..., 0], axis=0)                    # [sl, bs]
    attn_out = jnp.einsum('sb,sbd->bd', attn, keys)                  # [bs, D]
    h = jnp.concatenate([x, attn_out], axis=-1)                      # [bs, 2D]
    p1 = h @ wp1.T                                                   # [bs, D]
    return (p1 @ wp2.T).reshape(1, bs, -1)                           # [1, bs, out]


if __name__ == "__main__":
    # Small shapes consistent with the module's forward (single decode step).
    bs, input_size, att_nhid, output_size, seq_len = 8, 32, 64, 48, 12

    key = jax.random.PRNGKey(0)
    k_x, k_keys, k_wa1, k_wa2, k_wp1, k_wp2 = jax.random.split(key, 6)

    x = jax.random.normal(k_x, (bs, input_size), dtype=jnp.float32)
    keys = jax.random.normal(k_keys, (seq_len, bs, input_size), dtype=jnp.float32)

    initrange = 0.1
    wa1 = jax.random.uniform(k_wa1, (att_nhid, 2 * input_size), jnp.float32, -initrange, initrange)
    wa2 = jax.random.uniform(k_wa2, (1, att_nhid), jnp.float32, -initrange, initrange)
    wp1 = jax.random.uniform(k_wp1, (input_size, 2 * input_size), jnp.float32, -initrange, initrange)
    wp2 = jax.random.uniform(k_wp2, (output_size, input_size), jnp.float32, -initrange, initrange)

    # Weight prep happens once at "model load", not per decode step.
    params = prepare_attention_projection_params(wa1, wa2, wp1, wp2)

    # seq_tile=8 forces two sequence tiles plus a masked, zero-padded tail so the
    # online-softmax / masking paths are exercised even at this toy size.
    out = attention_projection(x, keys, params, seq_tile=8)
    out = jax.block_until_ready(out)

    ref = reference(x, keys, wa1, wa2, wp1, wp2)
    assert out.shape == (1, bs, output_size), out.shape
    err = float(jnp.max(jnp.abs(out - ref)))
    # bf16 MXU operands (x / keys / weights / probs) vs. the pure-f32 reference.
    assert err < 2e-2, err

    print("KERNEL_OK")
</pallas_src>

<mosaic_0001>
module attributes {stable_mosaic.version = 11 : i64} {
  func.func @attention_projection_kernel(%arg0: i32, %arg1: i32, %arg2: memref<8x32xbf16, #tpu.memory_space<vmem>>, %arg3: memref<8x8x32xbf16, #tpu.memory_space<vmem>>, %arg4: memref<32x128xbf16, #tpu.memory_space<vmem>>, %arg5: memref<32x128xbf16, #tpu.memory_space<vmem>>, %arg6: memref<1x128xbf16, #tpu.memory_space<vmem>>, %arg7: memref<32x128xbf16, #tpu.memory_space<vmem>>, %arg8: memref<32x128xbf16, #tpu.memory_space<vmem>>, %arg9: memref<8x128xf32, #tpu.memory_space<vmem>>, %arg10: memref<8x128xf32, #tpu.memory_space<vmem>>, %arg11: memref<8x1xf32, #tpu.memory_space<vmem>>, %arg12: memref<8x1xf32, #tpu.memory_space<vmem>>, %arg13: memref<8x32xf32, #tpu.memory_space<vmem>>) attributes {dimension_semantics = [#tpu.dimension_semantics<parallel>, #tpu.dimension_semantics<arbitrary>], iteration_bounds = array<i64: 1, 2>, scalar_prefetch = 0 : i64, scratch_operands = 4 : i64, tpu.core_type = #tpu.core_type<tc>, window_params = [{transform_indices = @transform_0, window_bounds = array<i64: 8, 32>}, {transform_indices = @transform_1, window_bounds = array<i64: 8, 8, 32>}, {pipeline_mode = #tpu.pipeline_mode<synchronous>, transform_indices = @transform_2, window_bounds = array<i64: 32, 128>}, {pipeline_mode = #tpu.pipeline_mode<synchronous>, transform_indices = @transform_3, window_bounds = array<i64: 32, 128>}, {pipeline_mode = #tpu.pipeline_mode<synchronous>, transform_indices = @transform_4, window_bounds = array<i64: 1, 128>}, {pipeline_mode = #tpu.pipeline_mode<synchronous>, transform_indices = @transform_5, window_bounds = array<i64: 32, 128>}, {pipeline_mode = #tpu.pipeline_mode<synchronous>, transform_indices = @transform_6, window_bounds = array<i64: 32, 128>}, {transform_indices = @transform_7, window_bounds = array<i64: 8, 128>}]} {
    %c0_i32 = arith.constant 0 : i32
    %0 = arith.cmpi eq, %arg1, %c0_i32 : i32
    %1 = arith.extui %0 : i1 to i32
    %c0_i32_0 = arith.constant 0 : i32
    %2 = arith.cmpi ne, %1, %c0_i32_0 : i32
    scf.if %2 {
      %c0_27 = arith.constant 0 : index
      %c0_28 = arith.constant 0 : index
      %54 = vector.load %arg2[%c0_27, %c0_28] : memref<8x32xbf16, #tpu.memory_space<vmem>>, vector<8x32xbf16>
      %c0_29 = arith.constant 0 : index
      %c0_30 = arith.constant 0 : index
      %55 = vector.load %arg4[%c0_29, %c0_30] : memref<32x128xbf16, #tpu.memory_space<vmem>>, vector<32x128xbf16>
      %cst_31 = arith.constant dense<0.000000e+00> : vector<8x128xf32>
      %56 = tpu.matmul %54, %55, %cst_31 {dimension_numbers = #tpu.dot_dimension_numbers<[1], [0], [0], [1], [0, 0, 1, 1], [], []>} : vector<8x32xbf16>, vector<32x128xbf16>, vector<8x128xf32> -> vector<8x128xf32>
      %c0_32 = arith.constant 0 : index
      %c0_33 = arith.constant 0 : index
      %57 = vector.load %arg10[%c0_32, %c0_33] : memref<8x128xf32, #tpu.memory_space<vmem>>, vector<8x128xf32>
      tpu.vector_store %arg10[%c0_32, %c0_33], %56 {strides = array<i32>} : memref<8x128xf32, #tpu.memory_space<vmem>>, vector<8x128xf32>,
      %cst_34 = arith.constant 0xFF800000 : f32
      %58 = vector.broadcast %cst_34 : f32 to vector<8x1xf32>
      %c0_35 = arith.constant 0 : index
      %c0_36 = arith.constant 0 : index
      %59 = vector.load %arg11[%c0_35, %c0_36] : memref<8x1xf32, #tpu.memory_space<vmem>>, vector<8x1xf32>
      tpu.vector_store %arg11[%c0_35, %c0_36], %58 {strides = array<i32>} : memref<8x1xf32, #tpu.memory_space<vmem>>, vector<8x1xf32>,
      %cst_37 = arith.constant 0.000000e+00 : f32
      %60 = vector.broadcast %cst_37 : f32 to vector<8x1xf32>
      %c0_38 = arith.constant 0 : index
      %c0_39 = arith.constant 0 : index
      %61 = vector.load %arg12[%c0_38, %c0_39] : memref<8x1xf32, #tpu.memory_space<vmem>>, vector<8x1xf32>
      tpu.vector_store %arg12[%c0_38, %c0_39], %60 {strides = array<i32>} : memref<8x1xf32, #tpu.memory_space<vmem>>, vector<8x1xf32>,
      %cst_40 = arith.constant 0.000000e+00 : f32
      %62 = vector.broadcast %cst_40 : f32 to vector<8x32xf32>
      %c0_41 = arith.constant 0 : index
      %c0_42 = arith.constant 0 : index
      %63 = vector.load %arg13[%c0_41, %c0_42] : memref<8x32xf32, #tpu.memory_space<vmem>>, vector<8x32xf32>
      tpu.vector_store %arg13[%c0_41, %c0_42], %62 {strides = array<i32>} : memref<8x32xf32, #tpu.memory_space<vmem>>, vector<8x32xf32>,
    } else {
    }
    %c0 = arith.constant 0 : index
    %c0_1 = arith.constant 0 : index
    %c0_2 = arith.constant 0 : index
    %3 = vector.load %arg3[%c0, %c0_1, %c0_2] : memref<8x8x32xbf16, #tpu.memory_space<vmem>>, vector<8x8x32xbf16>
    %c0_3 = arith.constant 0 : index
    %c0_4 = arith.constant 0 : index
    %4 = vector.load %arg5[%c0_3, %c0_4] : memref<32x128xbf16, #tpu.memory_space<vmem>>, vector<32x128xbf16>
    %cst = arith.constant dense<0.000000e+00> : vector<8x8x128xf32>
    %5 = tpu.matmul %3, %4, %cst {dimension_numbers = #tpu.dot_dimension_numbers<[2], [0], [0, 1], [1], [0, 0, 0, 1, 1, 1], [], []>} : vector<8x8x32xbf16>, vector<32x128xbf16>, vector<8x8x128xf32> -> vector<8x8x128xf32>
    %c0_5 = arith.constant 0 : index
    %c0_6 = arith.constant 0 : index
    %6 = vector.load %arg10[%c0_5, %c0_6] : memref<8x128xf32, #tpu.memory_space<vmem>>, vector<8x128xf32>
    %7 = vector.shape_cast %6 : vector<8x128xf32> to vector<8x1x128xf32>
    %8 = vector.broadcast %7 : vector<8x1x128xf32> to vector<8x8x128xf32>
    %9 = arith.addf %5, %8 : vector<8x8x128xf32>
    %10 = math.tanh %9 : vector<8x8x128xf32>
    %c0_7 = arith.constant 0 : index
    %c0_8 = arith.constant 0 : index
    %11 = vector.load %arg6[%c0_7, %c0_8] : memref<1x128xbf16, #tpu.memory_space<vmem>>, vector<1x128xbf16>
    %12 = arith.extf %11 : vector<1x128xbf16> to vector<1x128xf32>
    %13 = vector.shape_cast %12 : vector<1x128xf32> to vector<1x1x128xf32>
    %14 = vector.broadcast %13 : vector<1x1x128xf32> to vector<8x8x128xf32>
    %15 = arith.mulf %10, %14 : vector<8x8x128xf32>
    %cst_9 = arith.constant dense<0.000000e+00> : vector<8x8xf32>
    %16 = vector.multi_reduction <add>, %15, %cst_9 [2] : vector<8x8x128xf32> to vector<8x8xf32>
    %c8_i32 = arith.constant 8 : i32
    %17 = arith.muli %arg1, %c8_i32 : i32
    %18 = tpu.iota {dimensions = array<i32: 1>} : vector<8x8xi32>
    %19 = vector.broadcast %17 : i32 to vector<8x8xi32>
    %20 = arith.addi %19, %18 : vector<8x8xi32>
    %c12_i32 = arith.constant 12 : i32
    %21 = vector.broadcast %c12_i32 : i32 to vector<8x8xi32>
    %22 = arith.cmpi slt, %20, %21 : vector<8x8xi32>
    %cst_10 = arith.constant -1.000000e+30 : f32
    %23 = vector.broadcast %cst_10 : f32 to vector<8x8xf32>
    %24 = arith.select %22, %16, %23 : vector<8x8xi1>, vector<8x8xf32>
    %c0_11 = arith.constant 0 : index
    %c0_12 = arith.constant 0 : index
    %25 = vector.load %arg11[%c0_11, %c0_12] : memref<8x1xf32, #tpu.memory_space<vmem>>, vector<8x1xf32>
    %cst_13 = arith.constant dense<0xFF800000> : vector<8xf32>
    %26 = vector.multi_reduction <maximumf>, %24, %cst_13 [1] : vector<8x8xf32> to vector<8xf32>
    %27 = vector.shape_cast %26 : vector<8xf32> to vector<8x1xf32>
    %28 = arith.maximumf %25, %27 : vector<8x1xf32>
    %29 = arith.subf %25, %28 : vector<8x1xf32>
    %30 = math.exp %29 : vector<8x1xf32>
    %31 = vector.broadcast %28 : vector<8x1xf32> to vector<8x8xf32>
    %32 = arith.subf %24, %31 : vector<8x8xf32>
    %33 = math.exp %32 : vector<8x8xf32>
    %c0_14 = arith.constant 0 : index
    %c0_15 = arith.constant 0 : index
    %34 = vector.load %arg12[%c0_14, %c0_15] : memref<8x1xf32, #tpu.memory_space<vmem>>, vector<8x1xf32>
    %35 = arith.mulf %30, %34 : vector<8x1xf32>
    %cst_16 = arith.constant dense<0.000000e+00> : vector<8xf32>
    %36 = vector.multi_reduction <add>, %33, %cst_16 [1] : vector<8x8xf32> to vector<8xf32>
    %37 = vector.shape_cast %36 : vector<8xf32> to vector<8x1xf32>
    %38 = arith.addf %35, %37 : vector<8x1xf32>
    %c0_17 = arith.constant 0 : index
    %c0_18 = arith.constant 0 : index
    %39 = vector.load %arg12[%c0_17, %c0_18] : memref<8x1xf32, #tpu.memory_space<vmem>>, vector<8x1xf32>
    tpu.vector_store %arg12[%c0_17, %c0_18], %38 {strides = array<i32>} : memref<8x1xf32, #tpu.memory_space<vmem>>, vector<8x1xf32>,
    %40 = vector.shape_cast %33 : vector<8x8xf32> to vector<8x8x1xf32>
    %41 = arith.extf %3 : vector<8x8x32xbf16> to vector<8x8x32xf32>
    %42 = vector.broadcast %40 : vector<8x8x1xf32> to vector<8x8x32xf32>
    %43 = arith.mulf %42, %41 : vector<8x8x32xf32>
    %cst_19 = arith.constant dense<0.000000e+00> : vector<8x32xf32>
    %44 = vector.multi_reduction <add>, %43, %cst_19 [1] : vector<8x8x32xf32> to vector<8x32xf32>
    %c0_20 = arith.constant 0 : index
    %c0_21 = arith.constant 0 : index
    %45 = vector.load %arg13[%c0_20, %c0_21] : memref<8x32xf32, #tpu.memory_space<vmem>>, vector<8x32xf32>
    %46 = vector.broadcast %30 : vector<8x1xf32> to vector<8x32xf32>
    %47 = arith.mulf %46, %45 : vector<8x32xf32>
    %48 = arith.addf %47, %44 : vector<8x32xf32>
    %c0_22 = arith.constant 0 : index
    %c0_23 = arith.constant 0 : index
    %49 = vector.load %arg13[%c0_22, %c0_23] : memref<8x32xf32, #tpu.memory_space<vmem>>, vector<8x32xf32>
    tpu.vector_store %arg13[%c0_22, %c0_23], %48 {strides = array<i32>} : memref<8x32xf32, #tpu.memory_space<vmem>>, vector<8x32xf32>,
    %c0_24 = arith.constant 0 : index
    %c0_25 = arith.constant 0 : index
    %50 = vector.load %arg11[%c0_24, %c0_25] : memref<8x1xf32, #tpu.memory_space<vmem>>, vector<8x1xf32>
    tpu.vector_store %arg11[%c0_24, %c0_25], %28 {strides = array<i32>} : memref<8x1xf32, #tpu.memory_space<vmem>>, vector<8x1xf32>,
    %c1_i32 = arith.constant 1 : i32
    %51 = arith.cmpi eq, %arg1, %c1_i32 : i32
    %52 = arith.extui %51 : i1 to i32
    %c0_i32_26 = arith.constant 0 : i32
    %53 = arith.cmpi ne, %52, %c0_i32_26 : i32
    scf.if %53 {
      %c0_27 = arith.constant 0 : index
      %c0_28 = arith.constant 0 : index
      %54 = vector.load %arg13[%c0_27, %c0_28] : memref<8x32xf32, #tpu.memory_space<vmem>>, vector<8x32xf32>
      %c0_29 = arith.constant 0 : index
      %c0_30 = arith.constant 0 : index
      %55 = vector.load %arg12[%c0_29, %c0_30] : memref<8x1xf32, #tpu.memory_space<vmem>>, vector<8x1xf32>
      %56 = tpu.reciprocal %55 {approx = true} : vector<8x1xf32> -> vector<8x1xf32>
      %57 = vector.broadcast %56 : vector<8x1xf32> to vector<8x32xf32>
      %58 = arith.mulf %54, %57 : vector<8x32xf32>
      %c0_31 = arith.constant 0 : index
      %c0_32 = arith.constant 0 : index
      %59 = vector.load %arg2[%c0_31, %c0_32] : memref<8x32xbf16, #tpu.memory_space<vmem>>, vector<8x32xbf16>
      %c0_33 = arith.constant 0 : index
      %c0_34 = arith.constant 0 : index
      %60 = vector.load %arg7[%c0_33, %c0_34] : memref<32x128xbf16, #tpu.memory_space<vmem>>, vector<32x128xbf16>
      %cst_35 = arith.constant dense<0.000000e+00> : vector<8x128xf32>
      %61 = tpu.matmul %59, %60, %cst_35 {dimension_numbers = #tpu.dot_dimension_numbers<[1], [0], [0], [1], [0, 0, 1, 1], [], []>} : vector<8x32xbf16>, vector<32x128xbf16>, vector<8x128xf32> -> vector<8x128xf32>
      %62 = arith.truncf %58 : vector<8x32xf32> to vector<8x32xbf16>
      %c0_36 = arith.constant 0 : index
      %c0_37 = arith.constant 0 : index
      %63 = vector.load %arg8[%c0_36, %c0_37] : memref<32x128xbf16, #tpu.memory_space<vmem>>, vector<32x128xbf16>
      %cst_38 = arith.constant dense<0.000000e+00> : vector<8x128xf32>
      %64 = tpu.matmul %62, %63, %cst_38 {dimension_numbers = #tpu.dot_dimension_numbers<[1], [0], [0], [1], [0, 0, 1, 1], [], []>} : vector<8x32xbf16>, vector<32x128xbf16>, vector<8x128xf32> -> vector<8x128xf32>
      %65 = arith.addf %61, %64 : vector<8x128xf32>
      %c0_39 = arith.constant 0 : index
      %c0_40 = arith.constant 0 : index
      %66 = vector.load %arg9[%c0_39, %c0_40] : memref<8x128xf32, #tpu.memory_space<vmem>>, vector<8x128xf32>
      tpu.vector_store %arg9[%c0_39, %c0_40], %65 {strides = array<i32>} : memref<8x128xf32, #tpu.memory_space<vmem>>, vector<8x128xf32>,
    } else {
    }
    return
  }
  func.func @transform_0(%arg0: i32, %arg1: i32) -> (i32, i32) {
    %c0_i32 = arith.constant 0 : i32
    %c0_i32_0 = arith.constant 0 : i32
    return %arg0, %c0_i32 : i32, i32
  }
  func.func @transform_1(%arg0: i32, %arg1: i32) -> (i32, i32, i32) {
    %c0_i32 = arith.constant 0 : i32
    %c0_i32_0 = arith.constant 0 : i32
    return %arg0, %arg1, %c0_i32 : i32, i32, i32
  }
  func.func @transform_2(%arg0: i32, %arg1: i32) -> (i32, i32) {
    %c0_i32 = arith.constant 0 : i32
    %c0_i32_0 = arith.constant 0 : i32
    %c0_i32_1 = arith.constant 0 : i32
    return %c0_i32, %c0_i32_0 : i32, i32
  }
  func.func @transform_3(%arg0: i32, %arg1: i32) -> (i32, i32) {
    %c0_i32 = arith.constant 0 : i32
    %c0_i32_0 = arith.constant 0 : i32
    %c0_i32_1 = arith.constant 0 : i32
    return %c0_i32, %c0_i32_0 : i32, i32
  }
  func.func @transform_4(%arg0: i32, %arg1: i32) -> (i32, i32) {
    %c0_i32 = arith.constant 0 : i32
    %c0_i32_0 = arith.constant 0 : i32
    %c0_i32_1 = arith.constant 0 : i32
    return %c0_i32, %c0_i32_0 : i32, i32
  }
  func.func @transform_5(%arg0: i32, %arg1: i32) -> (i32, i32) {
    %c0_i32 = arith.constant 0 : i32
    %c0_i32_0 = arith.constant 0 : i32
    %c0_i32_1 = arith.constant 0 : i32
    return %c0_i32, %c0_i32_0 : i32, i32
  }
  func.func @transform_6(%arg0: i32, %arg1: i32) -> (i32, i32) {
    %c0_i32 = arith.constant 0 : i32
    %c0_i32_0 = arith.constant 0 : i32
    %c0_i32_1 = arith.constant 0 : i32
    return %c0_i32, %c0_i32_0 : i32, i32
  }
  func.func @transform_7(%arg0: i32, %arg1: i32) -> (i32, i32) {
    %c0_i32 = arith.constant 0 : i32
    %c0_i32_0 = arith.constant 0 : i32
    return %arg0, %c0_i32 : i32, i32
  }
}

</mosaic_0001>

<llo_original>
// kernel: tpu_custom_call.1
$region0: #{tpu_custom_call.1}
  #allocation0 [shape = 'u32[]', space=smem, size = 0x4, offset = 0x4, fixed_abs, tag = 'smem constant byte address 0x4 - core index']
  #allocation1 [shape = 'u32[144,128]{1,0:T(1,128)}', space=vmem, size = 0x12000, scoped, tag = 'internal scratch']
  #allocation2 [shape = 'f32[8,128]{1,0:T(8,128)}', space=vmem, size = 0x1000, scoped, tag = 'scratch operand']
  #allocation3 [shape = 'f32[8,1]{1,0:T(8,128)}', space=vmem, size = 0x1000, scoped, tag = 'scratch operand']
  #allocation4 [shape = 'f32[8,1]{1,0:T(8,128)}', space=vmem, size = 0x1000, scoped, tag = 'scratch operand']
  #allocation5 [shape = 'f32[8,32]{1,0:T(8,128)}', space=vmem, size = 0x1000, scoped, tag = 'scratch operand']
  %s0 = inlined_call_operand.hbm [shape: bf16[8,32], index: 0, kind: input, shape index: {}]
  %s1 = inlined_call_operand.hbm [shape: bf16[8,16,32], index: 1, kind: input, shape index: {}]
  %s2 = inlined_call_operand.hbm [shape: bf16[32,128], index: 2, kind: input, shape index: {}]
  %s3 = inlined_call_operand.hbm [shape: bf16[32,128], index: 3, kind: input, shape index: {}]
  %s4 = inlined_call_operand.vmem [shape: bf16[1,128], index: 4, kind: input, shape index: {}]
  %s5 = inlined_call_operand.vmem [shape: bf16[32,128], index: 5, kind: input, shape index: {}]
  %s6 = inlined_call_operand.hbm [shape: bf16[32,128], index: 6, kind: input, shape index: {}]
  %s7 = inlined_call_operand.hbm [shape: f32[8,128], index: 7, kind: output, shape index: {}]
  %s8 = sld [smem:[#allocation0]]
  $region89: #{tpu_custom_call.1} parent=0
    _
  %s10 = ssub.s32 1, %s8
  %s11 = scalar_select 0, %s10, %s8
  $region1: #{tpu_custom_call.1} parent=0
    #allocation6 [shape = 'u8[2048]{0}', space=vmem, size = 0x800, scoped, tag = 'input window, operand 0, single buffered']
    #allocation7 [shape = 's32[2]{0}', space=sflag, size = 0x8, scoped, tag = 'scoped memory for tpu_custom_call.1']
    #allocation8 [shape = 's32[2]{0}', space=sflag, size = 0x8, scoped, tag = 'scoped memory for tpu_custom_call.1']
    #allocation9 [shape = 'u8[32768]{0}', space=vmem, size = 0x8000, scoped, tag = 'input window, operand 1']
    #allocation10 [shape = 's32[2]{0}', space=sflag, size = 0x8, scoped, tag = 'scoped memory for tpu_custom_call.1']
    #allocation11 [shape = 'u8[8192]{0}', space=vmem, size = 0x2000, scoped, tag = 'input window, operand 2, single buffered']
    #allocation12 [shape = 'u8[8192]{0}', space=vmem, size = 0x2000, scoped, tag = 'input window, operand 3, single buffered']
    #allocation13 [shape = 's32[1]{0}', space=sflag, size = 0x4, scoped, tag = 'scoped memory for tpu_custom_call.1']
    #allocation14 [shape = 'u8[8192]{0}', space=vmem, size = 0x2000, scoped, tag = 'input window, operand 6, single buffered']
    #allocation15 [shape = 'u8[4096]{0}', space=vmem, size = 0x1000, scoped, tag = 'output window, operand 0, single buffered']
    %12 = vsyncpa [#allocation7], 0
    %13 = vsyncpa [#allocation10], 0
    %s14 = scalar_lea.sflag [#allocation10], 1
    %15 = vsyncpa %s14, 0
    %16 = vsyncpa [#allocation13], 0
    %17 = vsyncpa [#allocation8], 0
    loop: start=0, step=1, limit=4
    $region2: #{tpu_custom_call.1} parent=1 // loop_pre_header
      _
    $region3: #{tpu_custom_call.1} parent=1 // loop_header
      %s19 = sphi 0, %s23
      %p20 = scmp.ge.s32.totalorder %s19, 4
      %s26 = sphi 0, %s38
      %s27 = sphi 0, %s34
      %s28 = sphi 0, %s26
      %s29 = sphi 0, %s27
      %s30 = sphi 0, %s28
      %s31 = sphi 0, %s29
      %s41 = sphi 0, %s43
      %s44 = sphi 0, %s41
      %s45 = sphi 0, %s44
      %s61 = sphi 0, %s45
      %s69 = sphi 0, %s71
      %s72 = sphi 0, %s69
      %s73 = sphi 0, %s72
      %s89 = sphi 0, %s73
      %s93 = sphi 0, %s93
      %s95 = sphi 0, %s93
      %s96 = sphi 0, %s95
      %s110 = sphi 0, %s96
      %s114 = sphi 0, %s114
      %s116 = sphi 0, %s114
      %s117 = sphi 0, %s116
      %s131 = sphi 0, %s117
      %s135 = sphi 0, %s135
      %s137 = sphi 0, %s135
      %s138 = sphi 0, %s137
      %s152 = sphi 0, %s138
      %s156 = sphi 0, %s156
      %s158 = sphi 0, %s156
      %s159 = sphi 0, %s158
      %s173 = sphi 0, %s159
      %s177 = sphi 0, %s177
      %s179 = sphi 0, %s177
      %s180 = sphi 0, %s179
      %s194 = sphi 0, %s180
      %s200 = sphi 0, %s202
      %s203 = sphi 0, %s200
      %s204 = sphi 0, %s203
      %s220 = sphi 0, %s204
    $region4: #{tpu_custom_call.1} parent=1 // loop_header_branch
      %22 = sbr.rel (%p20) target = $region8
    $region5: #{tpu_custom_call.1} parent=1 // loop_body
      %s24 = ssub.s32 %s19, 1
      %s25 = ssub.s32 %s19, 2
      %s32 = sadd.s32 1, %s27
      %p33 = scmp.ge.s32.totalorder %s32, 2
      %s34 = scalar_select %p33, 0, %s32
      %s35 = sadd.s32 1, %s26
      %s36 = scalar_select %p33, %s35, %s26
      %p37 = scmp.ge.s32.totalorder %s36, 1
      %s38 = scalar_select %p37, 0, %s36
      %s39 = ssub.s32 %s26, %s38
      %p40 = scmp.eq.s32.totalorder %s39, 0
      %s42 = sadd.s32 %s41, 1
      %s43 = scalar_select %p40, %s41, %s42
      %p46 = pneg %p40
      %p47 = scmp.eq.s32.totalorder %s19, 1
      %p48 = por %p46, %p47
      %p49 = scmp.ne.s32.totalorder %s41, %s44
      %p50 = scmp.eq.s32.totalorder %s19, 0
      %p51 = por %p49, %p50
      %p52 = scmp.ne.s32.totalorder %s41, %s44
      %p53 = scmp.eq.s32.totalorder %s24, 1
      %p54 = por %p52, %p53
      %p55 = scmp.ne.s32.totalorder %s44, %s45
      %p56 = scmp.eq.s32.totalorder %s24, 0
      %p57 = por %p55, %p56
      %p58 = scmp.ne.s32.totalorder %s44, %s45
      %p59 = scmp.eq.s32.totalorder %s25, 1
      %p60 = por %p58, %p59
      %p62 = scmp.ne.s32.totalorder %s45, %s61
      %p63 = scmp.eq.s32.totalorder %s25, 0
      %p64 = por %p62, %p63
      %s65 = ssub.s32 %s26, %s38
      %s66 = ssub.s32 %s27, %s34
      %s67 = sor.u32 %s65, %s66
      %p68 = scmp.eq.s32.totalorder %s67, 0
      %s70 = sadd.s32 %s69, 1
      %s71 = scalar_select %p68, %s69, %s70
      %p74 = pneg %p68
      %p75 = scmp.eq.s32.totalorder %s19, 1
      %p76 = por %p74, %p75
      %p77 = scmp.ne.s32.totalorder %s69, %s72
      %p78 = scmp.eq.s32.totalorder %s19, 0
      %p79 = por %p77, %p78
      %p80 = scmp.ne.s32.totalorder %s69, %s72
      %p81 = scmp.eq.s32.totalorder %s24, 1
      %p82 = por %p80, %p81
      %p83 = scmp.ne.s32.totalorder %s72, %s73
      %p84 = scmp.eq.s32.totalorder %s24, 0
      %p85 = por %p83, %p84
      %p86 = scmp.ne.s32.totalorder %s72, %s73
      %p87 = scmp.eq.s32.totalorder %s25, 1
      %p88 = por %p86, %p87
      %p90 = scmp.ne.s32.totalorder %s73, %s89
      %p91 = scmp.eq.s32.totalorder %s25, 0
      %p92 = por %p90, %p91
      %s94 = sadd.s32 %s93, 1
      %p97 = scmp.eq.s32.totalorder %s19, 1
      %p98 = scmp.ne.s32.totalorder %s93, %s95
      %p99 = scmp.eq.s32.totalorder %s19, 0
      %p100 = por %p98, %p99
      %p101 = scmp.ne.s32.totalorder %s93, %s95
      %p102 = scmp.eq.s32.totalorder %s24, 1
      %p103 = por %p101, %p102
      %p104 = scmp.ne.s32.totalorder %s95, %s96
      %p105 = scmp.eq.s32.totalorder %s24, 0
      %p106 = por %p104, %p105
      %p107 = scmp.ne.s32.totalorder %s95, %s96
      %p108 = scmp.eq.s32.totalorder %s25, 1
      %p109 = por %p107, %p108
      %p111 = scmp.ne.s32.totalorder %s96, %s110
      %p112 = scmp.eq.s32.totalorder %s25, 0
      %p113 = por %p111, %p112
      %s115 = sadd.s32 %s114, 1
      %p118 = scmp.eq.s32.totalorder %s19, 1
      %p119 = scmp.ne.s32.totalorder %s114, %s116
      %p120 = scmp.eq.s32.totalorder %s19, 0
      %p121 = por %p119, %p120
      %p122 = scmp.ne.s32.totalorder %s114, %s116
      %p123 = scmp.eq.s32.totalorder %s24, 1
      %p124 = por %p122, %p123
      %p125 = scmp.ne.s32.totalorder %s116, %s117
      %p126 = scmp.eq.s32.totalorder %s24, 0
      %p127 = por %p125, %p126
      %p128 = scmp.ne.s32.totalorder %s116, %s117
      %p129 = scmp.eq.s32.totalorder %s25, 1
      %p130 = por %p128, %p129
      %p132 = scmp.ne.s32.totalorder %s117, %s131
      %p133 = scmp.eq.s32.totalorder %s25, 0
      %p134 = por %p132, %p133
      %s136 = sadd.s32 %s135, 1
      %p139 = scmp.eq.s32.totalorder %s19, 1
      %p140 = scmp.ne.s32.totalorder %s135, %s137
      %p141 = scmp.eq.s32.totalorder %s19, 0
      %p142 = por %p140, %p141
      %p143 = scmp.ne.s32.totalorder %s135, %s137
      %p144 = scmp.eq.s32.totalorder %s24, 1
      %p145 = por %p143, %p144
      %p146 = scmp.ne.s32.totalorder %s137, %s138
      %p147 = scmp.eq.s32.totalorder %s24, 0
      %p148 = por %p146, %p147
      %p149 = scmp.ne.s32.totalorder %s137, %s138
      %p150 = scmp.eq.s32.totalorder %s25, 1
      %p151 = por %p149, %p150
      %p153 = scmp.ne.s32.totalorder %s138, %s152
      %p154 = scmp.eq.s32.totalorder %s25, 0
      %p155 = por %p153, %p154
      %s157 = sadd.s32 %s156, 1
      %p160 = scmp.eq.s32.totalorder %s19, 1
      %p161 = scmp.ne.s32.totalorder %s156, %s158
      %p162 = scmp.eq.s32.totalorder %s19, 0
      %p163 = por %p161, %p162
      %p164 = scmp.ne.s32.totalorder %s156, %s158
      %p165 = scmp.eq.s32.totalorder %s24, 1
      %p166 = por %p164, %p165
      %p167 = scmp.ne.s32.totalorder %s158, %s159
      %p168 = scmp.eq.s32.totalorder %s24, 0
      %p169 = por %p167, %p168
      %p170 = scmp.ne.s32.totalorder %s158, %s159
      %p171 = scmp.eq.s32.totalorder %s25, 1
      %p172 = por %p170, %p171
      %p174 = scmp.ne.s32.totalorder %s159, %s173
      %p175 = scmp.eq.s32.totalorder %s25, 0
      %p176 = por %p174, %p175
      %s178 = sadd.s32 %s177, 1
      %p181 = scmp.eq.s32.totalorder %s19, 1
      %p182 = scmp.ne.s32.totalorder %s177, %s179
      %p183 = scmp.eq.s32.totalorder %s19, 0
      %p184 = por %p182, %p183
      %p185 = scmp.ne.s32.totalorder %s177, %s179
      %p186 = scmp.eq.s32.totalorder %s24, 1
      %p187 = por %p185, %p186
      %p188 = scmp.ne.s32.totalorder %s179, %s180
      %p189 = scmp.eq.s32.totalorder %s24, 0
      %p190 = por %p188, %p189
      %p191 = scmp.ne.s32.totalorder %s179, %s180
      %p192 = scmp.eq.s32.totalorder %s25, 1
      %p193 = por %p191, %p192
      %p195 = scmp.ne.s32.totalorder %s180, %s194
      %p196 = scmp.eq.s32.totalorder %s25, 0
      %p197 = por %p195, %p196
      %s198 = ssub.s32 %s26, %s38
      %p199 = scmp.eq.s32.totalorder %s198, 0
      %s201 = sadd.s32 %s200, 1
      %s202 = scalar_select %p199, %s200, %s201
      %p205 = pneg %p199
      %p206 = scmp.eq.s32.totalorder %s19, 1
      %p207 = por %p205, %p206
      %p208 = scmp.ne.s32.totalorder %s200, %s203
      %p209 = scmp.eq.s32.totalorder %s19, 0
      %p210 = por %p208, %p209
      %p211 = scmp.ne.s32.totalorder %s200, %s203
      %p212 = scmp.eq.s32.totalorder %s24, 1
      %p213 = por %p211, %p212
      %p214 = scmp.ne.s32.totalorder %s203, %s204
      %p215 = scmp.eq.s32.totalorder %s24, 0
      %p216 = por %p214, %p215
      %p217 = scmp.ne.s32.totalorder %s203, %s204
      %p218 = scmp.eq.s32.totalorder %s25, 1
      %p219 = por %p217, %p218
      %p221 = scmp.ne.s32.totalorder %s204, %s220
      %p222 = scmp.eq.s32.totalorder %s25, 0
      %p223 = por %p221, %p222
      %p224 = scmp.le.s32.totalorder 1, %s19
      %p225 = scmp.lt.s32.totalorder %s19, 3
      %p226 = pnand %p224, %p225
      %p227 = pneg %p226
      // Predicated region
      $region9: #{tpu_custom_call.1} parent=5 // pred_check
        _
      $region10: #{tpu_custom_call.1} parent=5 // pred_check_branch
        %229 = sbr.rel (%p226) target = $region12
      $region11: #{tpu_custom_call.1} parent=5 // pred_region
        %s230 = ssub.s32 %s19, 1
        // Predicated region
        $region13: #{tpu_custom_call.1} parent=11 // pred_check
          %p231 = pneg %p57
        $region14: #{tpu_custom_call.1} parent=11 // pred_check_branch
          %233 = sbr.rel (%p231) target = $region16
        $region15: #{tpu_custom_call.1} parent=11 // pred_region
          %s235 = ssub.s32 64, 64
          %236 = vsyncadd [#allocation7], %s235
          %s237 = smul.addr %s28, 64
          %s238 = scalar_lea.hbm %s0, %s237
          %s240 = sshll.u32 [#allocation6], 4
          %s241 = int_to_ptr.vmem [resolvable:$true] %s240
          %243 = dma.hbm_to_vmem [thread:$0]  %s238, 64, %s241, [#allocation7]
        $region16: #{tpu_custom_call.1} parent=11 // pred_fallthru
          _
        // Predicated region
        $region17: #{tpu_custom_call.1} parent=11 // pred_check
          %p244 = pneg %p106
        $region18: #{tpu_custom_call.1} parent=11 // pred_check_branch
          %246 = sbr.rel (%p244) target = $region20
        $region19: #{tpu_custom_call.1} parent=11 // pred_region
          %s248 = ssub.s32 256, 256
          %249 = vsyncadd [#allocation10], %s248
          %s250 = sshll.u32 [#allocation11], 4
          %s251 = int_to_ptr.vmem [resolvable:$true] %s250
          %256 = dma.hbm_to_vmem [thread:$0]  %s2, 256, %s251, [#allocation10], 64, 64, 4
        $region20: #{tpu_custom_call.1} parent=11 // pred_fallthru
          _
        // Predicated region
        $region21: #{tpu_custom_call.1} parent=11 // pred_check
          %p257 = pneg %p127
        $region22: #{tpu_custom_call.1} parent=11 // pred_check_branch
          %259 = sbr.rel (%p257) target = $region24
        $region23: #{tpu_custom_call.1} parent=11 // pred_region
          %s261 = ssub.s32 256, 256
          %262 = vsyncadd [#allocation13], %s261
          %s263 = sshll.u32 [#allocation12], 4
          %s264 = int_to_ptr.vmem [resolvable:$true] %s263
          %269 = dma.hbm_to_vmem [thread:$0]  %s3, 256, %s264, [#allocation13], 64, 64, 4
        $region24: #{tpu_custom_call.1} parent=11 // pred_fallthru
          _
        // Predicated region
        $region25: #{tpu_custom_call.1} parent=11 // pred_check
          %p270 = pneg %p148
        $region26: #{tpu_custom_call.1} parent=11 // pred_check_branch
          %272 = sbr.rel (%p270) target = $region28
        $region27: #{tpu_custom_call.1} parent=11 // pred_region
          _
        $region28: #{tpu_custom_call.1} parent=11 // pred_fallthru
          _
        // Predicated region
        $region29: #{tpu_custom_call.1} parent=11 // pred_check
          %p273 = pneg %p169
        $region30: #{tpu_custom_call.1} parent=11 // pred_check_branch
          %275 = sbr.rel (%p273) target = $region32
        $region31: #{tpu_custom_call.1} parent=11 // pred_region
          _
        $region32: #{tpu_custom_call.1} parent=11 // pred_fallthru
          _
        // Predicated region
        $region33: #{tpu_custom_call.1} parent=11 // pred_check
          %p276 = pneg %p190
        $region34: #{tpu_custom_call.1} parent=11 // pred_check_branch
          %278 = sbr.rel (%p276) target = $region36
        $region35: #{tpu_custom_call.1} parent=11 // pred_region
          %s280 = ssub.s32 256, 256
          %281 = vsyncadd [#allocation13], %s280
          %s282 = sshll.u32 [#allocation14], 4
          %s283 = int_to_ptr.vmem [resolvable:$true] %s282
          %288 = dma.hbm_to_vmem [thread:$0]  %s6, 256, %s283, [#allocation13], 64, 64, 4
        $region36: #{tpu_custom_call.1} parent=11 // pred_fallthru
          _
      $region12: #{tpu_custom_call.1} parent=5 // pred_fallthru
        _
      %p289 = scmp.lt.s32.totalorder %s19, 2
      // Predicated region
      $region37: #{tpu_custom_call.1} parent=5 // pred_check
        %p290 = pneg %p289
      $region38: #{tpu_custom_call.1} parent=5 // pred_check_branch
        %292 = sbr.rel (%p290) target = $region40
      $region39: #{tpu_custom_call.1} parent=5 // pred_region
        // Predicated region
        $region41: #{tpu_custom_call.1} parent=39 // pred_check
          %p293 = pneg %p79
        $region42: #{tpu_custom_call.1} parent=39 // pred_check_branch
          %295 = sbr.rel (%p293) target = $region44
        $region43: #{tpu_custom_call.1} parent=39 // pred_region
          %s296 = sand.u32 %s19, 1
          %s297 = scalar_lea.sflag [#allocation10], %s296
          %s298 = sand.u32 %s69, 1
          %s299 = smul.addr %s298, 32
          %s300 = scalar_lea.vmem [#allocation9], %s299
          %s301 = smul.u32 8, %s26
          %s303 = ssub.s32 512, 512
          %304 = vsyncadd %s297, %s303
          %s305 = smul.addr %s301, 2
          %s306 = sadd.s32 %s27, %s305
          %s307 = smul.addr %s306, 64
          %s308 = scalar_lea.hbm %s1, %s307
          %s309 = sshll.u32 %s300, 4
          %s310 = int_to_ptr.vmem [resolvable:$true] %s309
          %315 = dma.hbm_to_vmem [thread:$0]  %s308, 512, %s310, %s297, 128, 64, 4
        $region44: #{tpu_custom_call.1} parent=39 // pred_fallthru
          _
      $region40: #{tpu_custom_call.1} parent=5 // pred_fallthru
        _
      %p316 = scmp.le.s32.totalorder 1, %s19
      %p317 = scmp.lt.s32.totalorder %s19, 3
      %p318 = pnand %p316, %p317
      %p319 = pneg %p318
      // Predicated region
      $region45: #{tpu_custom_call.1} parent=5 // pred_check
        _
      $region46: #{tpu_custom_call.1} parent=5 // pred_check_branch
        %321 = sbr.rel (%p318) target = $region48
      $region47: #{tpu_custom_call.1} parent=5 // pred_region
        %s322 = ssub.s32 %s19, 1
        // Predicated region
        $region49: #{tpu_custom_call.1} parent=47 // pred_check
          %p323 = pneg %p57
        $region50: #{tpu_custom_call.1} parent=47 // pred_check_branch
          %325 = sbr.rel (%p323) target = $region52
        $region51: #{tpu_custom_call.1} parent=47 // pred_region
          %326 = dma.done [#allocation7], 64
        $region52: #{tpu_custom_call.1} parent=47 // pred_fallthru
          _
        %s327 = sand.u32 %s24, 1
        %s328 = scalar_lea.sflag [#allocation10], %s327
        %s329 = sand.u32 %s72, 1
        %s330 = smul.addr %s329, 32
        %s331 = scalar_lea.vmem [#allocation9], %s330
        // Predicated region
        $region53: #{tpu_custom_call.1} parent=47 // pred_check
          %p332 = pneg %p85
        $region54: #{tpu_custom_call.1} parent=47 // pred_check_branch
          %334 = sbr.rel (%p332) target = $region56
        $region55: #{tpu_custom_call.1} parent=47 // pred_region
          %335 = dma.done %s328, 512
        $region56: #{tpu_custom_call.1} parent=47 // pred_fallthru
          _
        // Predicated region
        $region57: #{tpu_custom_call.1} parent=47 // pred_check
          %p336 = pneg %p106
        $region58: #{tpu_custom_call.1} parent=47 // pred_check_branch
          %338 = sbr.rel (%p336) target = $region60
        $region59: #{tpu_custom_call.1} parent=47 // pred_region
          %339 = dma.done [#allocation10], 256
        $region60: #{tpu_custom_call.1} parent=47 // pred_fallthru
          _
        // Predicated region
        $region61: #{tpu_custom_call.1} parent=47 // pred_check
          %p340 = pneg %p127
        $region62: #{tpu_custom_call.1} parent=47 // pred_check_branch
          %342 = sbr.rel (%p340) target = $region64
        $region63: #{tpu_custom_call.1} parent=47 // pred_region
          %343 = dma.done [#allocation13], 256
        $region64: #{tpu_custom_call.1} parent=47 // pred_fallthru
          _
        // Predicated region
        $region65: #{tpu_custom_call.1} parent=47 // pred_check
          %p344 = pneg %p190
        $region66: #{tpu_custom_call.1} parent=47 // pred_check_branch
          %346 = sbr.rel (%p344) target = $region68
        $region67: #{tpu_custom_call.1} parent=47 // pred_region
          %347 = dma.done [#allocation13], 256
        $region68: #{tpu_custom_call.1} parent=47 // pred_fallthru
          _
        %p348 = pneg %p57
        %p349 = pneg %p54
        %s350 = sand.u32 %s24, 1
        %s351 = scalar_lea.sflag [#allocation10], %s350
        %s352 = sand.u32 %s72, 1
        %s353 = smul.addr %s352, 32
        %s354 = scalar_lea.vmem [#allocation9], %s353
        %p355 = pneg %p85
        %p356 = pneg %p82
        %p357 = pneg %p106
        %p358 = pneg %p103
        %p359 = pneg %p127
        %p360 = pneg %p124
        %p361 = pneg %p148
        %p362 = pneg %p145
        %p363 = pneg %p169
        %p364 = pneg %p166
        %p365 = pneg %p190
        %p366 = pneg %p187
        %p367 = pneg %p216
        %p368 = pneg %p213
        %s369 = smul.u32 8, %s28
        %p371 = scmp.eq.s32.totalorder %s29, 0
        // Predicated region
        $region69: #{tpu_custom_call.1} parent=47 // pred_check
          %p372 = pneg %p371
        $region70: #{tpu_custom_call.1} parent=47 // pred_check_branch
          %374 = sbr.rel (%p372) target = $region72
        $region71: #{tpu_custom_call.1} parent=47 // pred_region
          %v375 = vld [vmem:[#allocation6] sm:$0xf]
          %v376 = vld [vmem:[#allocation11] sm:$0xf]
          %v377 = vld [vmem:[#allocation11 + $0x4] sm:$0xf]
          %v378 = vld [vmem:[#allocation11 + $0x8] sm:$0xf]
          %v379 = vld [vmem:[#allocation11 + $0xc] sm:$0xf]
          %v384 = vunpack.c.l.b16 %v376
          %v385 = vunpack.c.l.b16 %v377
          %v386 = vunpack.c.l.b16 %v378
          %v387 = vunpack.c.l.b16 %v379
          %v388 = vpack.c.b16 %v385, %v384
          %v389 = vpack.c.b16 %v387, %v386
          %vm392 = vcmask 261120
          %v394 = vsel %vm392, %v375, 0
          %396 = vmatprep.subr.bf16.mxu0 0
          %397 = vmatpush1.bf16.msra.mxu0 %v388
          %398 = vmatprep.subr.bf16.mxu0 0
          %399 = vmatpush1.bf16.msra.mxu0 %v389
          %400 = vmatprep.subr.bf16.mxu0 0
          %401 = vmatpush1.bf16.msra.mxu0 0
          %402 = vmatprep.subr.bf16.mxu0 0
          %403 = vmatpush1.bf16.msra.mxu0 0
          %404 = vmatprep.subr.bf16.mxu0 0
          %405 = vmatpush1.bf16.msra.mxu0 0
          %406 = vmatprep.subr.bf16.mxu0 0
          %407 = vmatpush1.bf16.msra.mxu0 0
          %408 = vmatprep.subr.bf16.mxu0 0
          %409 = vmatpush1.bf16.msra.mxu0 0
          %410 = vmatprep.subr.bf16.mxu0 0
          %411 = vmatpush1.bf16.msra.mxu0 0
          %412 = vmatprep.subr.bf16.mxu0 0
          %413 = vmatpush1.bf16.msra.mxu0 0
          %414 = vmatprep.subr.bf16.mxu0 0
          %415 = vmatpush1.bf16.msra.mxu0 0
          %416 = vmatprep.subr.bf16.mxu0 0
          %417 = vmatpush1.bf16.msra.mxu0 0
          %418 = vmatprep.subr.bf16.mxu0 0
          %419 = vmatpush1.bf16.msra.mxu0 0
          %420 = vmatprep.subr.bf16.mxu0 0
          %421 = vmatpush1.bf16.msra.mxu0 0
          %422 = vmatprep.subr.bf16.mxu0 0
          %423 = vmatpush1.bf16.msra.mxu0 0
          %424 = vmatprep.subr.bf16.mxu0 0
          %425 = vmatpush1.bf16.msra.mxu0 0
          %426 = vmatprep.subr.bf16.mxu0 0
          %427 = vmatpush1.bf16.msra.mxu0 0
          %428 = vmatprep.mubr.bf16.mxu0 0
          %429 = vmatmul.mubr.bf16.gmra.mrb[0].mxu0 %v394
          %v430 = vpop.f32.mrb[0].mxu0
          %v431 = vadd.f32 0.0, %v430
          %v432 = vpop.f32.mrb[0].mxu0
          %v433 = vpop.f32.mrb[0].mxu0
          %v434 = vpop.f32.mrb[0].mxu0
          %435 = vdwg.mxu0
          %436 = vst [vmem:[#allocation2] sm:$0xff] %v431
          %vm437 = vcmask 7168
          %438 = vst.msk [vmem:[#allocation3] sm:$0xff] %vm437, -inf
          %439 = vst.msk [vmem:[#allocation4] sm:$0xff] %vm437, 0.0
          %440 = vst.msk [vmem:[#allocation5] sm:$0xff] %vm392, 0.0
        $region72: #{tpu_custom_call.1} parent=47 // pred_fallthru
          _
        %v441 = vld [vmem:[%s331] sm:$0xf]
        %v442 = vld [vmem:[%s331 + $0x4] sm:$0xf]
        %v443 = vld [vmem:[%s331 + $0x8] sm:$0xf]
        %v444 = vld [vmem:[%s331 + $0xc] sm:$0xf]
        %v445 = vld [vmem:[%s331 + $0x10] sm:$0xf]
        %v446 = vld [vmem:[%s331 + $0x14] sm:$0xf]
        %v447 = vld [vmem:[%s331 + $0x18] sm:$0xf]
        %v448 = vld [vmem:[%s331 + $0x1c] sm:$0xf]
        %v449 = vld [vmem:[#allocation12] sm:$0xf]
        %v450 = vld [vmem:[#allocation12 + $0x4] sm:$0xf]
        %v451 = vld [vmem:[#allocation12 + $0x8] sm:$0xf]
        %v452 = vld [vmem:[#allocation12 + $0xc] sm:$0xf]
        %v453 = vld [vmem:[#allocation2] sm:$0xff]
        %v455 = vcombine.high %v453, %v453
        %v457 = vunpack.c.l.s4 1966171168
        %v458 = vunpack.c.0.s8 %v457
        %v459 = vlaneseq
        %v460 = vshrl.u32 %v459, 7
        %v461 = vsub.s32 %v458, %v460
        %v462 = vrot.slane %v453, %v461
        %v464 = vunpack.c.l.s4 1966171168
        %v465 = vunpack.c.0.s8 %v464
        %v466 = vlaneseq
        %v467 = vshrl.u32 %v466, 7
        %v468 = vsub.s32 %v465, %v467
        %v469 = vrot.slane %v455, %v468
        %v470 = vcombine.high %v462, %v462
        %v471 = vcombine.high %v469, %v469
        %v473 = vunpack.c.l.s4 1966171168
        %v474 = vunpack.c.0.s8 %v473
        %v475 = vlaneseq
        %v476 = vshrl.u32 %v475, 7
        %v477 = vsub.s32 %v474, %v476
        %v478 = vrot.slane %v462, %v477
        %v480 = vunpack.c.l.s4 1966171168
        %v481 = vunpack.c.0.s8 %v480
        %v482 = vlaneseq
        %v483 = vshrl.u32 %v482, 7
        %v484 = vsub.s32 %v481, %v483
        %v485 = vrot.slane %v469, %v484
        %v487 = vunpack.c.l.s4 1966171168
        %v488 = vunpack.c.0.s8 %v487
        %v489 = vlaneseq
        %v490 = vshrl.u32 %v489, 7
        %v491 = vsub.s32 %v488, %v490
        %v492 = vrot.slane %v470, %v491
        %v494 = vunpack.c.l.s4 1966171168
        %v495 = vunpack.c.0.s8 %v494
        %v496 = vlaneseq
        %v497 = vshrl.u32 %v496, 7
        %v498 = vsub.s32 %v495, %v497
        %v499 = vrot.slane %v471, %v498
        %v500 = vcombine.high %v478, %v478
        %v501 = vcombine.high %v485, %v485
        %v502 = vcombine.high %v492, %v492
        %v503 = vcombine.high %v499, %v499
        %v504 = vlaneseq
        %v505 = vshrl.u32 %v504, 7
        %v506 = vsub.s32 0, %v505
        %v507 = vrot.slane %v478, %v506
        %v508 = vlaneseq
        %v509 = vshrl.u32 %v508, 7
        %v510 = vsub.s32 0, %v509
        %v511 = vrot.slane %v492, %v510
        %v512 = vlaneseq
        %v513 = vshrl.u32 %v512, 7
        %v514 = vsub.s32 0, %v513
        %v515 = vrot.slane %v500, %v514
        %v516 = vlaneseq
        %v517 = vshrl.u32 %v516, 7
        %v518 = vsub.s32 0, %v517
        %v519 = vrot.slane %v502, %v518
        %v520 = vlaneseq
        %v521 = vshrl.u32 %v520, 7
        %v522 = vsub.s32 0, %v521
        %v523 = vrot.slane %v485, %v522
        %v524 = vlaneseq
        %v525 = vshrl.u32 %v524, 7
        %v526 = vsub.s32 0, %v525
        %v527 = vrot.slane %v499, %v526
        %v528 = vlaneseq
        %v529 = vshrl.u32 %v528, 7
        %v530 = vsub.s32 0, %v529
        %v531 = vrot.slane %v501, %v530
        %v532 = vlaneseq
        %v533 = vshrl.u32 %v532, 7
        %v534 = vsub.s32 0, %v533
        %v535 = vrot.slane %v503, %v534
        %v552 = vunpack.c.l.b16 %v441
        %v553 = vunpack.c.l.b16 %v442
        %v554 = vunpack.c.l.b16 %v443
        %v555 = vunpack.c.l.b16 %v444
        %v556 = vunpack.c.l.b16 %v445
        %v557 = vunpack.c.l.b16 %v446
        %v558 = vunpack.c.l.b16 %v447
        %v559 = vunpack.c.l.b16 %v448
        %v560 = vpack.c.b16 %v553, %v552
        %v561 = vpack.c.b16 %v555, %v554
        %v562 = vpack.c.b16 %v557, %v556
        %v563 = vpack.c.b16 %v559, %v558
        %v568 = vunpack.c.l.b16 %v449
        %v569 = vunpack.c.l.b16 %v450
        %v570 = vunpack.c.l.b16 %v451
        %v571 = vunpack.c.l.b16 %v452
        %v572 = vpack.c.b16 %v569, %v568
        %v573 = vpack.c.b16 %v571, %v570
        %vm576 = vcmask 261120
        %v578 = vsel %vm576, %v560, 0
        %v581 = vsel %vm576, %v561, 0
        %v584 = vsel %vm576, %v562, 0
        %v587 = vsel %vm576, %v563, 0
        %589 = vmatprep.subr.bf16.mxu0 0
        %590 = vmatpush1.bf16.msra.mxu0 %v572
        %591 = vmatprep.subr.bf16.mxu0 0
        %592 = vmatpush1.bf16.msra.mxu0 %v573
        %593 = vmatprep.subr.bf16.mxu0 0
        %594 = vmatpush1.bf16.msra.mxu0 0
        %595 = vmatprep.subr.bf16.mxu0 0
        %596 = vmatpush1.bf16.msra.mxu0 0
        %597 = vmatprep.subr.bf16.mxu0 0
        %598 = vmatpush1.bf16.msra.mxu0 0
        %599 = vmatprep.subr.bf16.mxu0 0
        %600 = vmatpush1.bf16.msra.mxu0 0
        %601 = vmatprep.subr.bf16.mxu0 0
        %602 = vmatpush1.bf16.msra.mxu0 0
        %603 = vmatprep.subr.bf16.mxu0 0
        %604 = vmatpush1.bf16.msra.mxu0 0
        %605 = vmatprep.subr.bf16.mxu0 0
        %606 = vmatpush1.bf16.msra.mxu0 0
        %607 = vmatprep.subr.bf16.mxu0 0
        %608 = vmatpush1.bf16.msra.mxu0 0
        %609 = vmatprep.subr.bf16.mxu0 0
        %610 = vmatpush1.bf16.msra.mxu0 0
        %611 = vmatprep.subr.bf16.mxu0 0
        %612 = vmatpush1.bf16.msra.mxu0 0
        %613 = vmatprep.subr.bf16.mxu0 0
        %614 = vmatpush1.bf16.msra.mxu0 0
        %615 = vmatprep.subr.bf16.mxu0 0
        %616 = vmatpush1.bf16.msra.mxu0 0
        %617 = vmatprep.subr.bf16.mxu0 0
        %618 = vmatpush1.bf16.msra.mxu0 0
        %619 = vmatprep.subr.bf16.mxu0 0
        %620 = vmatpush1.bf16.msra.mxu0 0
        %621 = vmatprep.mubr.bf16.mxu0 0
        %622 = vmatmul.mubr.bf16.gmra.mrb[0].mxu0 %v578
        %v623 = vpop.f32.mrb[0].mxu0
        %v624 = vadd.f32 %v507, %v623
        %v625 = vpop.f32.mrb[0].mxu0
        %v626 = vpop.f32.mrb[0].mxu0
        %v627 = vadd.f32 %v511, %v626
        %v628 = vpop.f32.mrb[0].mxu0
        %629 = vmatprep.mubr.bf16.mxu0 0
        %630 = vmatmul.mubr.bf16.gmra.mrb[0].mxu0 %v581
        %v631 = vpop.f32.mrb[0].mxu0
        %v632 = vadd.f32 %v515, %v631
        %v633 = vpop.f32.mrb[0].mxu0
        %v634 = vpop.f32.mrb[0].mxu0
        %v635 = vadd.f32 %v519, %v634
        %v636 = vpop.f32.mrb[0].mxu0
        %637 = vmatprep.mubr.bf16.mxu0 0
        %638 = vmatmul.mubr.bf16.gmra.mrb[0].mxu0 %v584
        %v639 = vpop.f32.mrb[0].mxu0
        %v640 = vadd.f32 %v523, %v639
        %v641 = vpop.f32.mrb[0].mxu0
        %v642 = vpop.f32.mrb[0].mxu0
        %v643 = vadd.f32 %v527, %v642
        %v644 = vpop.f32.mrb[0].mxu0
        %645 = vmatprep.mubr.bf16.mxu0 0
        %646 = vmatmul.mubr.bf16.gmra.mrb[0].mxu0 %v587
        %v647 = vpop.f32.mrb[0].mxu0
        %v648 = vadd.f32 %v531, %v647
        %v649 = vpop.f32.mrb[0].mxu0
        %v650 = vpop.f32.mrb[0].mxu0
        %v651 = vadd.f32 %v535, %v650
        %v652 = vpop.f32.mrb[0].mxu0
        %653 = vdwg.mxu0
        %v654 = vtanh.pop %v624
        %v655 = vtanh.pop %v627
        %v656 = vtanh.pop %v632
        %v657 = vtanh.pop %v635
        %v658 = vtanh.pop %v640
        %v659 = vtanh.pop %v643
        %v660 = vtanh.pop %v648
        %v661 = vtanh.pop %v651
        %v662 = vld [vmem:[%s4] sm:$0x1]
        %v663 = vunpack.c.l.bf16 %v662
        %v664 = vlaneseq
        %v665 = vshrl.u32 %v664, 7
        %v666 = vsub.s32 0, %v665
        %v667 = vrot.slane %v663, %v666
        %v668 = vmul.f32 %v654, %v667
        %v669 = vmul.f32 %v655, %v667
        %v670 = vmul.f32 %v656, %v667
        %v671 = vmul.f32 %v657, %v667
        %v672 = vmul.f32 %v658, %v667
        %v673 = vmul.f32 %v659, %v667
        %v674 = vmul.f32 %v660, %v667
        %v675 = vmul.f32 %v661, %v667
        %676 = vadd.xlane.f32.xlu0 %v668
        %v677 = vpop.xlane.xlu0 %676
        %678 = vadd.xlane.f32.xlu0 %v669
        %v679 = vpop.xlane.xlu0 %678
        %680 = vadd.xlane.f32.xlu0 %v670
        %v681 = vpop.xlane.xlu0 %680
        %682 = vadd.xlane.f32.xlu0 %v671
        %v683 = vpop.xlane.xlu0 %682
        %684 = vadd.xlane.f32.xlu0 %v672
        %v685 = vpop.xlane.xlu0 %684
        %686 = vadd.xlane.f32.xlu0 %v673
        %v687 = vpop.xlane.xlu0 %686
        %688 = vadd.xlane.f32.xlu0 %v674
        %v689 = vpop.xlane.xlu0 %688
        %690 = vadd.xlane.f32.xlu0 %v675
        %v691 = vpop.xlane.xlu0 %690
        %s692 = smul.u32 %s29, 8
        %v693 = vlaneseq
        %v694 = vand.u32 %v693, 127
        %v695 = vstv %s692
        %v696 = vadd.s32 %v695, %v694
        %vm697 = vcmp.lt.s32.totalorder %v696, 12
        %v706 = vlaneseq
        %v707 = vshrl.u32 %v706, 7
        %v708 = vsub.s32 %v694, %v707
        %v709 = vrot.slane %v677, %v708
        %v710 = vlaneseq
        %v711 = vshrl.u32 %v710, 7
        %v712 = vsub.s32 %v694, %v711
        %v713 = vrot.slane %v679, %v712
        %v714 = vlaneseq
        %v715 = vshrl.u32 %v714, 7
        %v716 = vsub.s32 %v694, %v715
        %v717 = vrot.slane %v681, %v716
        %v718 = vlaneseq
        %v719 = vshrl.u32 %v718, 7
        %v720 = vsub.s32 %v694, %v719
        %v721 = vrot.slane %v683, %v720
        %v722 = vlaneseq
        %v723 = vshrl.u32 %v722, 7
        %v724 = vsub.s32 %v694, %v723
        %v725 = vrot.slane %v685, %v724
        %v726 = vlaneseq
        %v727 = vshrl.u32 %v726, 7
        %v728 = vsub.s32 %v694, %v727
        %v729 = vrot.slane %v687, %v728
        %v730 = vlaneseq
        %v731 = vshrl.u32 %v730, 7
        %v732 = vsub.s32 %v694, %v731
        %v733 = vrot.slane %v689, %v732
        %v734 = vlaneseq
        %v735 = vshrl.u32 %v734, 7
        %v736 = vsub.s32 %v694, %v735
        %v737 = vrot.slane %v691, %v736
        %vm738 = vcmask 1041409
        %v739 = vsel %vm738, %v713, %v709
        %vm740 = vcmask 1042434
        %v741 = vsel %vm740, %v717, %v739
        %vm742 = vcmask 1043459
        %v743 = vsel %vm742, %v721, %v741
        %vm744 = vcmask 1044484
        %v745 = vsel %vm744, %v725, %v743
        %vm746 = vcmask 1045509
        %v747 = vsel %vm746, %v729, %v745
        %vm748 = vcmask 1046534
        %v749 = vsel %vm748, %v733, %v747
        %vm750 = vcmask 1047559
        %v751 = vsel %vm750, %v737, %v749
        %v753 = vsel %vm697, %v751, -1e+30
        %v754 = vld [vmem:[#allocation3] sm:$0xff]
        %vm755 = vcmask 64512
        %v756 = vsel %vm755, %v753, -inf
        %757 = vmax.xlane.f32.xlu0 %v756
        %v758 = vpop.xlane.xlu0 %757
        %v759 = vmax.f32 %v754, %v758
        %v760 = vsub.f32 %v754, %v759
        %v761 = vmul.f32 %v760, 1.442695
        %v762 = vpow.pop %v761
        %764 = vset.pattern.permute.xlu0 0
        %765 = vperm.xlu0 %764, %v759
        %v766 = vpop.permute.xlu0 %765
        %v768 = vsub.f32 %v753, %v766
        %v769 = vmul.f32 %v768, 1.442695
        %v770 = vpow.pop %v769
        %v771 = vld [vmem:[#allocation4] sm:$0xff]
        %v772 = vmul.f32 %v762, %v771
        %v773 = vsel %vm755, %v770, 0.0
        %774 = vadd.xlane.f32.xlu0 %v773
        %v775 = vpop.xlane.xlu0 %774
        %v776 = vadd.f32 %v772, %v775
        %vm777 = vcmask 7168
        %778 = vst.msk [vmem:[#allocation4] sm:$0xff] %vm777, %v776
        %v779 = vlaneseq
        %v780 = vshrl.u32 %v779, 7
        %v781 = vsub.s32 0, %v780
        %v782 = vrot.slane %v770, %v781
        %784 = vbcast.lane.b32.xlu0 %v782, 256
        %v785 = vpop.permute.xlu0 %784
        %v786 = vlaneseq
        %v787 = vshrl.u32 %v786, 7
        %v788 = vsub.s32 1, %v787
        %v789 = vrot.slane %v770, %v788
        %791 = vbcast.lane.b32.xlu0 %v789, 256
        %v792 = vpop.permute.xlu0 %791
        %v793 = vlaneseq
        %v794 = vshrl.u32 %v793, 7
        %v795 = vsub.s32 2, %v794
        %v796 = vrot.slane %v770, %v795
        %798 = vbcast.lane.b32.xlu0 %v796, 256
        %v799 = vpop.permute.xlu0 %798
        %v800 = vlaneseq
        %v801 = vshrl.u32 %v800, 7
        %v802 = vsub.s32 3, %v801
        %v803 = vrot.slane %v770, %v802
        %805 = vbcast.lane.b32.xlu0 %v803, 256
        %v806 = vpop.permute.xlu0 %805
        %v807 = vlaneseq
        %v808 = vshrl.u32 %v807, 7
        %v809 = vsub.s32 4, %v808
        %v810 = vrot.slane %v770, %v809
        %812 = vbcast.lane.b32.xlu0 %v810, 256
        %v813 = vpop.permute.xlu0 %812
        %v814 = vlaneseq
        %v815 = vshrl.u32 %v814, 7
        %v816 = vsub.s32 5, %v815
        %v817 = vrot.slane %v770, %v816
        %819 = vbcast.lane.b32.xlu0 %v817, 256
        %v820 = vpop.permute.xlu0 %819
        %v821 = vlaneseq
        %v822 = vshrl.u32 %v821, 7
        %v823 = vsub.s32 6, %v822
        %v824 = vrot.slane %v770, %v823
        %826 = vbcast.lane.b32.xlu0 %v824, 256
        %v827 = vpop.permute.xlu0 %826
        %v828 = vlaneseq
        %v829 = vshrl.u32 %v828, 7
        %v830 = vsub.s32 7, %v829
        %v831 = vrot.slane %v770, %v830
        %833 = vbcast.lane.b32.xlu0 %v831, 256
        %v834 = vpop.permute.xlu0 %833
        %v835 = vunpack.c.l.bf16 %v441
        %v836 = vunpack.c.l.bf16 %v442
        %v837 = vunpack.c.l.bf16 %v443
        %v838 = vunpack.c.l.bf16 %v444
        %v839 = vunpack.c.l.bf16 %v445
        %v840 = vunpack.c.l.bf16 %v446
        %v841 = vunpack.c.l.bf16 %v447
        %v842 = vunpack.c.l.bf16 %v448
        %v843 = vmul.f32 %v785, %v835
        %v844 = vmul.f32 %v792, %v836
        %v845 = vmul.f32 %v799, %v837
        %v846 = vmul.f32 %v806, %v838
        %v847 = vmul.f32 %v813, %v839
        %v848 = vmul.f32 %v820, %v840
        %v849 = vmul.f32 %v827, %v841
        %v850 = vmul.f32 %v834, %v842
        %v851 = vsel %vm576, %v843, 0.0
        %v852 = vrot.slane %v851, 4
        %v853 = vadd.f32 %v851, %v852
        %v854 = vrot.slane %v853, 2
        %v855 = vadd.f32 %v853, %v854
        %v856 = vrot.slane %v855, 1
        %v857 = vadd.f32 %v855, %v856
        %v858 = vsel %vm576, %v844, 0.0
        %v859 = vrot.slane %v858, 4
        %v860 = vadd.f32 %v858, %v859
        %v861 = vrot.slane %v860, 2
        %v862 = vadd.f32 %v860, %v861
        %v863 = vrot.slane %v862, 1
        %v864 = vadd.f32 %v862, %v863
        %v865 = vsel %vm576, %v845, 0.0
        %v866 = vrot.slane %v865, 4
        %v867 = vadd.f32 %v865, %v866
        %v868 = vrot.slane %v867, 2
        %v869 = vadd.f32 %v867, %v868
        %v870 = vrot.slane %v869, 1
        %v871 = vadd.f32 %v869, %v870
        %v872 = vsel %vm576, %v846, 0.0
        %v873 = vrot.slane %v872, 4
        %v874 = vadd.f32 %v872, %v873
        %v875 = vrot.slane %v874, 2
        %v876 = vadd.f32 %v874, %v875
        %v877 = vrot.slane %v876, 1
        %v878 = vadd.f32 %v876, %v877
        %v879 = vsel %vm576, %v847, 0.0
        %v880 = vrot.slane %v879, 4
        %v881 = vadd.f32 %v879, %v880
        %v882 = vrot.slane %v881, 2
        %v883 = vadd.f32 %v881, %v882
        %v884 = vrot.slane %v883, 1
        %v885 = vadd.f32 %v883, %v884
        %v886 = vsel %vm576, %v848, 0.0
        %v887 = vrot.slane %v886, 4
        %v888 = vadd.f32 %v886, %v887
        %v889 = vrot.slane %v888, 2
        %v890 = vadd.f32 %v888, %v889
        %v891 = vrot.slane %v890, 1
        %v892 = vadd.f32 %v890, %v891
        %v893 = vsel %vm576, %v849, 0.0
        %v894 = vrot.slane %v893, 4
        %v895 = vadd.f32 %v893, %v894
        %v896 = vrot.slane %v895, 2
        %v897 = vadd.f32 %v895, %v896
        %v898 = vrot.slane %v897, 1
        %v899 = vadd.f32 %v897, %v898
        %v900 = vsel %vm576, %v850, 0.0
        %v901 = vrot.slane %v900, 4
        %v902 = vadd.f32 %v900, %v901
        %v903 = vrot.slane %v902, 2
        %v904 = vadd.f32 %v902, %v903
        %v905 = vrot.slane %v904, 1
        %v906 = vadd.f32 %v904, %v905
        %v907 = vld [vmem:[#allocation5] sm:$0xff]
        %909 = vset.pattern.permute.xlu0 0
        %910 = vperm.xlu0 %909, %v762
        %v911 = vpop.permute.xlu0 %910
        %v913 = vmul.f32 %v911, %v907
        %v922 = vsel %vm738, %v864, %v857
        %v923 = vsel %vm740, %v871, %v922
        %v924 = vsel %vm742, %v878, %v923
        %v925 = vsel %vm744, %v885, %v924
        %v926 = vsel %vm746, %v892, %v925
        %v927 = vsel %vm748, %v899, %v926
        %v928 = vsel %vm750, %v906, %v927
        %v930 = vadd.f32 %v913, %v928
        %931 = vst.msk [vmem:[#allocation5] sm:$0xff] %vm576, %v930
        %932 = vst.msk [vmem:[#allocation3] sm:$0xff] %vm777, %v759
        %p933 = scmp.eq.s32.totalorder %s29, 1
        // Predicated region
        $region73: #{tpu_custom_call.1} parent=47 // pred_check
          %p934 = pneg %p933
        $region74: #{tpu_custom_call.1} parent=47 // pred_check_branch
          %936 = sbr.rel (%p934) target = $region76
        $region75: #{tpu_custom_call.1} parent=47 // pred_region
          %v937 = vld [vmem:[#allocation5] sm:$0xff]
          %v938 = vld [vmem:[#allocation4] sm:$0xff]
          %v939 = vrcp.pop %v938
          %941 = vset.pattern.permute.xlu0 0
          %942 = vperm.xlu0 %941, %v939
          %v943 = vpop.permute.xlu0 %942
          %v945 = vmul.f32 %v937, %v943
          %v946 = vld [vmem:[#allocation6] sm:$0xf]
          %v947 = vld [vmem:[%s5] sm:$0xf]
          %v948 = vld [vmem:[%s5 + $0x4] sm:$0xf]
          %v949 = vld [vmem:[%s5 + $0x8] sm:$0xf]
          %v950 = vld [vmem:[%s5 + $0xc] sm:$0xf]
          %v951 = vpack.c.bf16 %v945, %v945
          %v952 = vld [vmem:[#allocation14] sm:$0xf]
          %v953 = vld [vmem:[#allocation14 + $0x4] sm:$0xf]
          %v954 = vld [vmem:[#allocation14 + $0x8] sm:$0xf]
          %v955 = vld [vmem:[#allocation14 + $0xc] sm:$0xf]
          %v960 = vunpack.c.l.b16 %v952
          %v961 = vunpack.c.l.b16 %v953
          %v962 = vunpack.c.l.b16 %v954
          %v963 = vunpack.c.l.b16 %v955
          %v964 = vpack.c.b16 %v961, %v960
          %v965 = vpack.c.b16 %v963, %v962
          %v969 = vsel %vm576, %v951, 0
          %971 = vmatprep.subr.bf16.mxu0 0
          %972 = vmatpush1.bf16.msra.mxu0 %v964
          %973 = vmatprep.subr.bf16.mxu0 0
          %974 = vmatpush1.bf16.msra.mxu0 %v965
          %975 = vmatprep.subr.bf16.mxu0 0
          %976 = vmatpush1.bf16.msra.mxu0 0
          %977 = vmatprep.subr.bf16.mxu0 0
          %978 = vmatpush1.bf16.msra.mxu0 0
          %979 = vmatprep.subr.bf16.mxu0 0
          %980 = vmatpush1.bf16.msra.mxu0 0
          %981 = vmatprep.subr.bf16.mxu0 0
          %982 = vmatpush1.bf16.msra.mxu0 0
          %983 = vmatprep.subr.bf16.mxu0 0
          %984 = vmatpush1.bf16.msra.mxu0 0
          %985 = vmatprep.subr.bf16.mxu0 0
          %986 = vmatpush1.bf16.msra.mxu0 0
          %987 = vmatprep.subr.bf16.mxu0 0
          %988 = vmatpush1.bf16.msra.mxu0 0
          %989 = vmatprep.subr.bf16.mxu0 0
          %990 = vmatpush1.bf16.msra.mxu0 0
          %991 = vmatprep.subr.bf16.mxu0 0
          %992 = vmatpush1.bf16.msra.mxu0 0
          %993 = vmatprep.subr.bf16.mxu0 0
          %994 = vmatpush1.bf16.msra.mxu0 0
          %995 = vmatprep.subr.bf16.mxu0 0
          %996 = vmatpush1.bf16.msra.mxu0 0
          %997 = vmatprep.subr.bf16.mxu0 0
          %998 = vmatpush1.bf16.msra.mxu0 0
          %999 = vmatprep.subr.bf16.mxu0 0
          %1000 = vmatpush1.bf16.msra.mxu0 0
          %1001 = vmatprep.subr.bf16.mxu0 0
          %1002 = vmatpush1.bf16.msra.mxu0 0
          %1003 = vmatprep.mubr.bf16.mxu0 0
          %1004 = vmatmul.mubr.bf16.gmra.mrb[0].mxu0 %v969
          %v1005 = vpop.f32.mrb[0].mxu0
          %v1006 = vadd.f32 0.0, %v1005
          %v1007 = vpop.f32.mrb[0].mxu0
          %v1008 = vpop.f32.mrb[0].mxu0
          %v1009 = vpop.f32.mrb[0].mxu0
          %1010 = vdwg.mxu0
          %v1015 = vunpack.c.l.b16 %v947
          %v1016 = vunpack.c.l.b16 %v948
          %v1017 = vunpack.c.l.b16 %v949
          %v1018 = vunpack.c.l.b16 %v950
          %v1019 = vpack.c.b16 %v1016, %v1015
          %v1020 = vpack.c.b16 %v1018, %v1017
          %v1024 = vsel %vm576, %v946, 0
          %1026 = vmatprep.subr.bf16.mxu0 0
          %1027 = vmatpush1.bf16.msra.mxu0 %v1019
          %1028 = vmatprep.subr.bf16.mxu0 0
          %1029 = vmatpush1.bf16.msra.mxu0 %v1020
          %1030 = vmatprep.subr.bf16.mxu0 0
          %1031 = vmatpush1.bf16.msra.mxu0 0
          %1032 = vmatprep.subr.bf16.mxu0 0
          %1033 = vmatpush1.bf16.msra.mxu0 0
          %1034 = vmatprep.subr.bf16.mxu0 0
          %1035 = vmatpush1.bf16.msra.mxu0 0
          %1036 = vmatprep.subr.bf16.mxu0 0
          %1037 = vmatpush1.bf16.msra.mxu0 0
          %1038 = vmatprep.subr.bf16.mxu0 0
          %1039 = vmatpush1.bf16.msra.mxu0 0
          %1040 = vmatprep.subr.bf16.mxu0 0
          %1041 = vmatpush1.bf16.msra.mxu0 0
          %1042 = vmatprep.subr.bf16.mxu0 0
          %1043 = vmatpush1.bf16.msra.mxu0 0
          %1044 = vmatprep.subr.bf16.mxu0 0
          %1045 = vmatpush1.bf16.msra.mxu0 0
          %1046 = vmatprep.subr.bf16.mxu0 0
          %1047 = vmatpush1.bf16.msra.mxu0 0
          %1048 = vmatprep.subr.bf16.mxu0 0
          %1049 = vmatpush1.bf16.msra.mxu0 0
          %1050 = vmatprep.subr.bf16.mxu0 0
          %1051 = vmatpush1.bf16.msra.mxu0 0
          %1052 = vmatprep.subr.bf16.mxu0 0
          %1053 = vmatpush1.bf16.msra.mxu0 0
          %1054 = vmatprep.subr.bf16.mxu0 0
          %1055 = vmatpush1.bf16.msra.mxu0 0
          %1056 = vmatprep.subr.bf16.mxu0 0
          %1057 = vmatpush1.bf16.msra.mxu0 0
          %1058 = vmatprep.mubr.bf16.mxu0 0
          %1059 = vmatmul.mubr.bf16.gmra.mrb[0].mxu0 %v1024
          %v1060 = vpop.f32.mrb[0].mxu0
          %v1061 = vadd.f32 %v1006, %v1060
          %v1062 = vpop.f32.mrb[0].mxu0
          %v1063 = vpop.f32.mrb[0].mxu0
          %v1064 = vpop.f32.mrb[0].mxu0
          %1065 = vdwg.mxu0
          %1066 = vst [vmem:[#allocation15] sm:$0xff] %v1061
        $region76: #{tpu_custom_call.1} parent=47 // pred_fallthru
          _
        // Predicated region
        $region77: #{tpu_custom_call.1} parent=47 // pred_check
          %p1067 = pneg %p213
        $region78: #{tpu_custom_call.1} parent=47 // pred_check_branch
          %1069 = sbr.rel (%p1067) target = $region80
        $region79: #{tpu_custom_call.1} parent=47 // pred_region
          %s1071 = ssub.s32 128, 128
          %1072 = vsyncadd [#allocation8], %s1071
          %s1073 = smul.addr %s28, 128
          %s1074 = scalar_lea.hbm %s7, %s1073
          %s1076 = sshll.u32 [#allocation15], 4
          %s1077 = int_to_ptr.vmem [resolvable:$true] %s1076
          %1079 = dma.vmem_to_hbm [thread:$0]  %s1077, 128, %s1074, [#allocation8]
        $region80: #{tpu_custom_call.1} parent=47 // pred_fallthru
          _
        // Predicated region
        $region81: #{tpu_custom_call.1} parent=47 // pred_check
          %p1080 = pneg %p213
        $region82: #{tpu_custom_call.1} parent=47 // pred_check_branch
          %1082 = sbr.rel (%p1080) target = $region84
        $region83: #{tpu_custom_call.1} parent=47 // pred_region
          %1083 = dma.done [#allocation8], 128
        $region84: #{tpu_custom_call.1} parent=47 // pred_fallthru
          _
      $region48: #{tpu_custom_call.1} parent=5 // pred_fallthru
        _
      %p1084 = scmp.le.s32.totalorder 2, %s19
      // Predicated region
      $region85: #{tpu_custom_call.1} parent=5 // pred_check
        %p1085 = pneg %p1084
      $region86: #{tpu_custom_call.1} parent=5 // pred_check_branch
        %1087 = sbr.rel (%p1085) target = $region88
      $region87: #{tpu_custom_call.1} parent=5 // pred_region
        %s1088 = ssub.s32 %s19, 2
      $region88: #{tpu_custom_call.1} parent=5 // pred_fallthru
        _
    $region6: #{tpu_custom_call.1} parent=1 // loop_footer
      %s23 = sadd.s32 1, %s19
    $region7: #{tpu_custom_call.1} parent=1 // loop_footer_branch
      %18 = sbr.rel target = $region3
    $region8: #{tpu_custom_call.1} parent=1 // loop_exit
      _
    %1089 = vsyncpa [#allocation7], 1
    %s1090 = scalar_lea.sflag [#allocation7], 1
    %1091 = vsyncpa %s1090, 1
    %1092 = vsyncpa [#allocation10], 1
    %s1093 = scalar_lea.sflag [#allocation10], 1
    %1094 = vsyncpa %s1093, 1
    %1095 = vsyncpa [#allocation13], 1
    %1096 = vsyncpa [#allocation8], 1
    %s1097 = scalar_lea.sflag [#allocation8], 1
    %1098 = vsyncpa %s1097, 1

</llo_original>
